<compile_context>
chip_gen: v7x
topology: tpu7x:2x2x1
jax: 0.10.0
libtpu: 0.0.40
codegen_flags: <defaults>
</compile_context>

<pallas_src>
import jax
import jax.numpy as jnp
from jax.experimental import pallas as pl
from jax.experimental.pallas import tpu as pltpu


# ----------------------------- Pallas kernel ---------------------------------
def _decode_kernel(has_memory: bool):
    """One decode step per grid iteration; h/c carried in a VMEM scratch."""

    def kernel(*refs):
        if has_memory:
            idx_ref, ctx_ref, hc0_ref, wf_ref, wg_ref, wo_ref, out_ref, hc_scr = refs
        else:
            idx_ref, ctx_ref, wf_ref, wg_ref, wo_ref, out_ref, hc_scr = refs

        S, two_h = hc_scr.shape
        H = two_h // 2
        N = out_ref.shape[1] - two_h          # num_notes
        K_front = N + two_h                   # contraction dim of the front matmul

        t = pl.program_id(0)

        # ---- initialize the recurrent carry once (step 0) ----
        @pl.when(t == 0)
        def _():
            if has_memory:
                hc_scr[...] = hc0_ref[...]
            else:
                hc_scr[...] = jnp.zeros_like(hc_scr)

        # ---- folded embedding + combine_fc + relu:
        #      relu([onehot(idx) | ctx] @ [embed@Wc_emb ; Wc_ctx] + b_combine)
        note_iota = jax.lax.broadcasted_iota(jnp.int32, (S, N), 1)
        onehot = (note_iota == idx_ref[...]).astype(jnp.float32)        # (S, N)
        front = jnp.concatenate([onehot, ctx_ref[...]], axis=-1)        # (S, N+2H) == (S,128)
        x = jnp.dot(front, wf_ref[0:K_front, :],
                    preferred_element_type=jnp.float32)
        x = jnp.maximum(x + wf_ref[K_front:K_front + 1, :], 0.0)        # (S, H)
        # TODO(synk): dropout omitted (inference mode -> identity)

        # ---- fused LSTM gate matmul: [x | h_prev] @ [w_ih ; w_hh] + (b_ih + b_hh)
        h0 = hc_scr[:, 0:H]
        c0 = hc_scr[:, H:two_h]
        xh = jnp.concatenate([x, h0], axis=-1)                          # (S, 2H)
        gates = (jnp.dot(xh, wg_ref[0:two_h, :],
                         preferred_element_type=jnp.float32)
                 + wg_ref[two_h:two_h + 1, :])                          # (S, 4H)

        # ---- whole-vreg activations; tanh only on the g-gate lanes ----
        lane = jax.lax.broadcasted_iota(jnp.int32, gates.shape, 1)
        is_g = (lane >= 2 * H) & (lane < 3 * H)
        acted = jnp.where(is_g, jnp.tanh(gates), jax.nn.sigmoid(gates))

        i_g = acted[:, 0 * H:1 * H]
        f_g = acted[:, 1 * H:2 * H]
        g_g = acted[:, 2 * H:3 * H]
        o_g = acted[:, 3 * H:4 * H]

        c = f_g * c0 + i_g * g_g
        h = o_g * jnp.tanh(c)

        # ---- notes_output + packed lane-dense store [notes | h | c] ----
        notes = (jnp.dot(h, wo_ref[0:H, :],
                         preferred_element_type=jnp.float32)
                 + wo_ref[H:H + 1, :])                                  # (S, N)

        out_ref[...] = jnp.concatenate([notes, h, c], axis=-1)          # (S, N+2H)
        hc_scr[...] = jnp.concatenate([h, c], axis=-1)                  # carry to next step

    return kernel


# ------------------------------ param packing ---------------------------------
def pack_params(params):
    """Pack logical parameters into three dense weight blobs (done ONCE, not per call).

    The embedding table is folded through the combine matmul; each blob carries its
    bias as one extra trailing sublane row, so no zero padding is DMA'd.
    """
    H = params["w_ih"].shape[0]
    N = params["w_out"].shape[1]
    hi = jax.lax.Precision.HIGHEST

    # Fold: (onehot @ embed) @ Wc_emb == onehot @ (embed @ Wc_emb)
    e_fold = jnp.dot(params["embed"], params["w_combine"][0:H, :], precision=hi)  # (N, H)

    w_front = jnp.concatenate(
        [e_fold,                                # rows [0, N)        : folded embedding
         params["w_combine"][H:3 * H, :],       # rows [N, N+2H)     : context part
         params["b_combine"]], axis=0           # row  N+2H          : bias
    ).astype(jnp.float32)                       # (N+2H+1, H)

    w_gates = jnp.concatenate(
        [params["w_ih"],                        # rows [0, H)
         params["w_hh"],                        # rows [H, 2H)
         params["b_ih"] + params["b_hh"]], axis=0  # row 2H: pre-summed LSTM biases
    ).astype(jnp.float32)                       # (2H+1, 4H)

    w_out = jnp.concatenate(
        [params["w_out"], params["b_out"]], axis=0
    ).astype(jnp.float32)                       # (H+1, N)

    return {"w_front": w_front, "w_gates": w_gates, "w_out": w_out,
            "hidden_dim": H, "num_notes": N}


# ------------------------------- wrappers --------------------------------------
def local_attn_decoder_decode(tgt_steps, ctx_steps, packed, memory=None):
    """T fused decode steps == T sequential module.forward calls with memory chaining.

    tgt_steps: (T, S, 1) int; ctx_steps: (T, S, 1, 2H) or (T, S, 2H);
    memory: None or (h0, c0) each (1, S, H).
    Returns notes (T, S, N) and final memory (h_n, c_n) each (1, S, H).
    """
    T, S = tgt_steps.shape[0], tgt_steps.shape[1]
    H = packed["hidden_dim"]
    N = packed["num_notes"]
    has_memory = memory is not None

    idx = tgt_steps.reshape(T, S, 1).astype(jnp.int32)
    ctx = ctx_steps.reshape(T, S, 2 * H).astype(jnp.float32)

    args = [idx, ctx]
    in_specs = [
        pl.BlockSpec((None, S, 1), lambda t: (t, 0, 0)),          # per-step tgt
        pl.BlockSpec((None, S, 2 * H), lambda t: (t, 0, 0)),      # per-step context
    ]
    if has_memory:
        hc0 = jnp.concatenate([memory[0].reshape(S, H),
                               memory[1].reshape(S, H)], axis=-1).astype(jnp.float32)
        args.append(hc0)
        in_specs.append(pl.BlockSpec((S, 2 * H), lambda t: (0, 0)))  # fetched once

    for name in ("w_front", "w_gates", "w_out"):
        w = packed[name]
        args.append(w)
        # Constant block index -> DMA'd once, stays resident in VMEM across all steps.
        in_specs.append(pl.BlockSpec(w.shape, lambda t: (0, 0)))

    out_spec = pl.BlockSpec((None, S, N + 2 * H), lambda t: (t, 0, 0))

    flops = 2 * T * S * ((N + 2 * H) * H + 2 * H * 4 * H + H * N)
    transcendentals = T * S * (4 * H + 4 * H + H)
    bytes_accessed = int(sum(int(a.size) * a.dtype.itemsize for a in args)
                         + T * S * (N + 2 * H) * 4)

    packed_out = pl.pallas_call(
        _decode_kernel(has_memory),
        grid=(T,),
        out_shape=jax.ShapeDtypeStruct((T, S, N + 2 * H), jnp.float32),
        in_specs=in_specs,
        out_specs=out_spec,
        scratch_shapes=[pltpu.VMEM((S, 2 * H), jnp.float32)],
        compiler_params=pltpu.CompilerParams(
            dimension_semantics=("arbitrary",)),   # sequential carry through scratch
        cost_estimate=pl.CostEstimate(flops=flops,
                                      transcendentals=transcendentals,
                                      bytes_accessed=bytes_accessed),
    )(*args)

    notes = packed_out[:, :, 0:N]                                   # (T, S, N)
    h_n = packed_out[T - 1, :, N:N + H].reshape(1, S, H)
    c_n = packed_out[T - 1, :, N + H:N + 2 * H].reshape(1, S, H)
    return notes, (h_n, c_n)


def local_attn_decoder_forward(tgt, context, packed, memory=None):
    """Single module.forward call: tgt (S,1) int; context (S,1,2H); memory None/(h,c)."""
    S = tgt.shape[0]
    N = packed["num_notes"]
    notes, mem = local_attn_decoder_decode(tgt[None], context[None], packed, memory)
    return notes[0].reshape(S, 1, N), mem


# --------------------------- pure-JAX reference --------------------------------
def _reference_forward(tgt, context, params, memory=None):
    with jax.default_matmul_precision("float32"):
        S = tgt.shape[0]
        H = params["w_ih"].shape[0]
        emb = params["embed"][tgt[:, 0]]
        ctx = context.reshape(S, -1)
        x = jnp.concatenate([emb, ctx], axis=-1)
        x = jnp.maximum(x @ params["w_combine"] + params["b_combine"], 0.0)
        h0 = jnp.zeros((S, H)) if memory is None else memory[0].reshape(S, H)
        c0 = jnp.zeros((S, H)) if memory is None else memory[1].reshape(S, H)
        gates = (x @ params["w_ih"] + params["b_ih"]
                 + h0 @ params["w_hh"] + params["b_hh"])
        i = jax.nn.sigmoid(gates[:, 0 * H:1 * H])
        f = jax.nn.sigmoid(gates[:, 1 * H:2 * H])
        g = jnp.tanh(gates[:, 2 * H:3 * H])
        o = jax.nn.sigmoid(gates[:, 3 * H:4 * H])
        c = f * c0 + i * g
        h = o * jnp.tanh(c)
        out = h @ params["w_out"] + params["b_out"]
        N = params["w_out"].shape[1]
        return out.reshape(S, 1, N), (h.reshape(1, S, H), c.reshape(1, S, H))


# ------------------------------ param init -------------------------------------
def init_params(key, hidden_dim, num_notes):
    ks = jax.random.split(key, 10)
    H, N = hidden_dim, num_notes
    k_fc = 1.0 / jnp.sqrt(3.0 * H)
    k_rnn = 1.0 / jnp.sqrt(float(H))
    k_out = 1.0 / jnp.sqrt(float(H))
    u = lambda k, shape, s: jax.random.uniform(k, shape, jnp.float32, -s, s)
    return {
        # Embedding(num_notes, H)  (PyTorch default: N(0, 1))
        "embed": jax.random.normal(ks[0], (N, H), jnp.float32),
        # Linear(3H, H) stored transposed as (3H, H)
        "w_combine": u(ks[1], (3 * H, H), k_fc),
        "b_combine": u(ks[2], (1, H), k_fc),
        # LSTM(H, H): weight_ih (4H, H) / weight_hh (4H, H) stored transposed
        "w_ih": u(ks[3], (H, 4 * H), k_rnn),
        "b_ih": u(ks[4], (1, 4 * H), k_rnn),
        "w_hh": u(ks[5], (H, 4 * H), k_rnn),
        "b_hh": u(ks[6], (1, 4 * H), k_rnn),
        # Linear(H, N) stored transposed as (H, N)
        "w_out": u(ks[7], (H, N), k_out),
        "b_out": u(ks[8], (1, N), k_out),
    }


# --------------------------------- main -----------------------------------------
if __name__ == "__main__":
    hidden_dim = 32
    num_notes = 64
    seq_len = 8
    n_steps = 4

    key = jax.random.PRNGKey(0)
    kp, kt, kc, kt2, kc2 = jax.random.split(key, 5)

    params = init_params(kp, hidden_dim, num_notes)
    packed = pack_params(params)

    tgt = jax.random.randint(kt, (seq_len, 1), 0, num_notes, dtype=jnp.int32)
    context = jax.random.normal(kc, (seq_len, 1, 2 * hidden_dim), jnp.float32)

    # Single module.forward calls: memory=None, then feed the produced memory back.
    out1, mem1 = local_attn_decoder_forward(tgt, context, packed, memory=None)
    out2, mem2 = local_attn_decoder_forward(tgt, context, packed, memory=mem1)

    # Fused multi-step decode: n_steps forward calls in ONE pallas_call (resident weights,
    # h/c carried in VMEM across grid iterations).
    tgt_steps = jax.random.randint(kt2, (n_steps, seq_len, 1), 0, num_notes, dtype=jnp.int32)
    ctx_steps = jax.random.normal(kc2, (n_steps, seq_len, 1, 2 * hidden_dim), jnp.float32)
    notes_steps, mem_steps = local_attn_decoder_decode(tgt_steps, ctx_steps, packed, memory=None)

    jax.block_until_ready((out1, mem1, out2, mem2, notes_steps, mem_steps))

    # ---- references ----
    ref1, rmem1 = _reference_forward(tgt, context, params, memory=None)
    ref2, rmem2 = _reference_forward(tgt, context, params, memory=rmem1)

    rmem = None
    ref_notes = []
    for t in range(n_steps):
        o, rmem = _reference_forward(tgt_steps[t], ctx_steps[t], params, rmem)
        ref_notes.append(o[:, 0, :])
    ref_notes = jnp.stack(ref_notes)                        # (T, S, N)

    assert out1.shape == (seq_len, 1, num_notes)
    assert mem1[0].shape == (1, seq_len, hidden_dim)
    assert mem1[1].shape == (1, seq_len, hidden_dim)
    assert notes_steps.shape == (n_steps, seq_len, num_notes)

    checks = [(out1, ref1), (mem1[0], rmem1[0]), (mem1[1], rmem1[1]),
              (out2, ref2), (mem2[0], rmem2[0]), (mem2[1], rmem2[1]),
              (notes_steps, ref_notes), (mem_steps[0], rmem[0]), (mem_steps[1], rmem[1])]
    for got, want in checks:
        assert got.shape == want.shape, (got.shape, want.shape)
        assert jnp.allclose(got, want, rtol=1e-3, atol=1e-3), \
            float(jnp.max(jnp.abs(got - want)))

    print("KERNEL_OK")
</pallas_src>

<mosaic_0001>
module attributes {stable_mosaic.version = 11 : i64} {
  func.func @kernel(%arg0: i32, %arg1: memref<1x8x1xi32, #tpu.memory_space<vmem>>, %arg2: memref<1x8x64xf32, #tpu.memory_space<vmem>>, %arg3: memref<129x32xf32, #tpu.memory_space<vmem>>, %arg4: memref<65x128xf32, #tpu.memory_space<vmem>>, %arg5: memref<33x64xf32, #tpu.memory_space<vmem>>, %arg6: memref<1x8x128xf32, #tpu.memory_space<vmem>>, %arg7: memref<8x64xf32, #tpu.memory_space<vmem>>) attributes {dimension_semantics = [#tpu.dimension_semantics<arbitrary>], iteration_bounds = array<i64: 1>, scalar_prefetch = 0 : i64, scratch_operands = 1 : i64, tpu.core_type = #tpu.core_type<tc>, window_params = [{transform_indices = @transform_0, window_bounds = array<i64: 1, 8, 1>}, {transform_indices = @transform_1, window_bounds = array<i64: 1, 8, 64>}, {pipeline_mode = #tpu.pipeline_mode<synchronous>, transform_indices = @transform_2, window_bounds = array<i64: 129, 32>}, {pipeline_mode = #tpu.pipeline_mode<synchronous>, transform_indices = @transform_3, window_bounds = array<i64: 65, 128>}, {pipeline_mode = #tpu.pipeline_mode<synchronous>, transform_indices = @transform_4, window_bounds = array<i64: 33, 64>}, {transform_indices = @transform_5, window_bounds = array<i64: 1, 8, 128>}]} {
    %c0_i32 = arith.constant 0 : i32
    %0 = arith.cmpi eq, %arg0, %c0_i32 : i32
    %1 = arith.extui %0 : i1 to i32
    %c0_i32_0 = arith.constant 0 : i32
    %2 = arith.cmpi ne, %1, %c0_i32_0 : i32
    scf.if %2 {
      %cst_28 = arith.constant 0.000000e+00 : f32
      %61 = vector.broadcast %cst_28 : f32 to vector<8x64xf32>
      %c0_29 = arith.constant 0 : index
      %c0_30 = arith.constant 0 : index
      %62 = vector.load %arg7[%c0_29, %c0_30] : memref<8x64xf32, #tpu.memory_space<vmem>>, vector<8x64xf32>
      tpu.vector_store %arg7[%c0_29, %c0_30], %61 {strides = array<i32>} : memref<8x64xf32, #tpu.memory_space<vmem>>, vector<8x64xf32>,
    } else {
    }
    %3 = tpu.iota {dimensions = array<i32: 1>} : vector<8x64xi32>
    %c0 = arith.constant 0 : index
    %c0_1 = arith.constant 0 : index
    %c0_2 = arith.constant 0 : index
    %4 = vector.load %arg1[%c0, %c0_1, %c0_2] : memref<1x8x1xi32, #tpu.memory_space<vmem>>, vector<1x8x1xi32>
    %5 = vector.shape_cast %4 : vector<1x8x1xi32> to vector<8x1xi32>
    %6 = vector.broadcast %5 : vector<8x1xi32> to vector<8x64xi32>
    %7 = arith.cmpi eq, %3, %6 : vector<8x64xi32>
    %8 = arith.extui %7 : vector<8x64xi1> to vector<8x64xi32>
    %9 = arith.sitofp %8 : vector<8x64xi32> to vector<8x64xf32>
    %c0_3 = arith.constant 0 : index
    %c0_4 = arith.constant 0 : index
    %c0_5 = arith.constant 0 : index
    %10 = vector.load %arg2[%c0_3, %c0_4, %c0_5] : memref<1x8x64xf32, #tpu.memory_space<vmem>>, vector<1x8x64xf32>
    %11 = vector.shape_cast %10 : vector<1x8x64xf32> to vector<8x64xf32>
    %12 = tpu.concatenate %9, %11 in 1 : vector<8x64xf32>, vector<8x64xf32> -> vector<8x128xf32>
    %c0_6 = arith.constant 0 : index
    %c0_7 = arith.constant 0 : index
    %13 = vector.load %arg3[%c0_6, %c0_7] : memref<129x32xf32, #tpu.memory_space<vmem>>, vector<128x32xf32>
    %cst = arith.constant dense<0.000000e+00> : vector<8x32xf32>
    %14 = tpu.matmul %12, %13, %cst {dimension_numbers = #tpu.dot_dimension_numbers<[1], [0], [0], [1], [0, 0, 1, 1], [], []>} : vector<8x128xf32>, vector<128x32xf32>, vector<8x32xf32> -> vector<8x32xf32>
    %c128 = arith.constant 128 : index
    %c0_8 = arith.constant 0 : index
    %15 = vector.load %arg3[%c128, %c0_8] : memref<129x32xf32, #tpu.memory_space<vmem>>, vector<1x32xf32>
    %16 = vector.broadcast %15 : vector<1x32xf32> to vector<8x32xf32>
    %17 = arith.addf %14, %16 : vector<8x32xf32>
    %cst_9 = arith.constant 0.000000e+00 : f32
    %18 = vector.broadcast %cst_9 : f32 to vector<8x32xf32>
    %19 = arith.maximumf %17, %18 : vector<8x32xf32>
    %c0_10 = arith.constant 0 : index
    %c0_11 = arith.constant 0 : index
    %20 = vector.load %arg7[%c0_10, %c0_11] : memref<8x64xf32, #tpu.memory_space<vmem>>, vector<8x32xf32>
    %c0_12 = arith.constant 0 : index
    %c32 = arith.constant 32 : index
    %21 = vector.load %arg7[%c0_12, %c32] : memref<8x64xf32, #tpu.memory_space<vmem>>, vector<8x32xf32>
    %22 = tpu.concatenate %19, %20 in 1 : vector<8x32xf32>, vector<8x32xf32> -> vector<8x64xf32>
    %c0_13 = arith.constant 0 : index
    %c0_14 = arith.constant 0 : index
    %23 = vector.load %arg4[%c0_13, %c0_14] : memref<65x128xf32, #tpu.memory_space<vmem>>, vector<64x128xf32>
    %cst_15 = arith.constant dense<0.000000e+00> : vector<8x128xf32>
    %24 = tpu.matmul %22, %23, %cst_15 {dimension_numbers = #tpu.dot_dimension_numbers<[1], [0], [0], [1], [0, 0, 1, 1], [], []>} : vector<8x64xf32>, vector<64x128xf32>, vector<8x128xf32> -> vector<8x128xf32>
    %c64 = arith.constant 64 : index
    %c0_16 = arith.constant 0 : index
    %25 = vector.load %arg4[%c64, %c0_16] : memref<65x128xf32, #tpu.memory_space<vmem>>, vector<1x128xf32>
    %26 = vector.broadcast %25 : vector<1x128xf32> to vector<8x128xf32>
    %27 = arith.addf %24, %26 : vector<8x128xf32>
    %28 = tpu.iota {dimensions = array<i32: 1>} : vector<8x128xi32>
    %c64_i32 = arith.constant 64 : i32
    %29 = vector.broadcast %c64_i32 : i32 to vector<8x128xi32>
    %30 = arith.cmpi sge, %28, %29 : vector<8x128xi32>
    %c96_i32 = arith.constant 96 : i32
    %31 = vector.broadcast %c96_i32 : i32 to vector<8x128xi32>
    %32 = arith.cmpi slt, %28, %31 : vector<8x128xi32>
    %33 = arith.andi %30, %32 : vector<8x128xi1>
    %34 = math.tanh %27 : vector<8x128xf32>
    %35 = arith.negf %27 : vector<8x128xf32>
    %36 = math.exp %35 : vector<8x128xf32>
    %cst_17 = arith.constant 1.000000e+00 : f32
    %37 = vector.broadcast %cst_17 : f32 to vector<8x128xf32>
    %38 = arith.addf %37, %36 : vector<8x128xf32>
    %39 = arith.divf %37, %38 : vector<8x128xf32>
    %40 = arith.select %33, %34, %39 : vector<8x128xi1>, vector<8x128xf32>
    %41 = vector.extract_strided_slice %40 {offsets = [0, 0], sizes = [8, 32], strides = [1, 1]} : vector<8x128xf32> to vector<8x32xf32>
    %42 = vector.extract_strided_slice %40 {offsets = [0, 32], sizes = [8, 32], strides = [1, 1]} : vector<8x128xf32> to vector<8x32xf32>
    %43 = vector.extract_strided_slice %40 {offsets = [0, 64], sizes = [8, 32], strides = [1, 1]} : vector<8x128xf32> to vector<8x32xf32>
    %44 = vector.extract_strided_slice %40 {offsets = [0, 96], sizes = [8, 32], strides = [1, 1]} : vector<8x128xf32> to vector<8x32xf32>
    %45 = arith.mulf %42, %21 : vector<8x32xf32>
    %46 = arith.mulf %41, %43 : vector<8x32xf32>
    %47 = arith.addf %45, %46 : vector<8x32xf32>
    %48 = math.tanh %47 : vector<8x32xf32>
    %49 = arith.mulf %44, %48 : vector<8x32xf32>
    %c0_18 = arith.constant 0 : index
    %c0_19 = arith.constant 0 : index
    %50 = vector.load %arg5[%c0_18, %c0_19] : memref<33x64xf32, #tpu.memory_space<vmem>>, vector<32x64xf32>
    %cst_20 = arith.constant dense<0.000000e+00> : vector<8x64xf32>
    %51 = tpu.matmul %49, %50, %cst_20 {dimension_numbers = #tpu.dot_dimension_numbers<[1], [0], [0], [1], [0, 0, 1, 1], [], []>} : vector<8x32xf32>, vector<32x64xf32>, vector<8x64xf32> -> vector<8x64xf32>
    %c32_21 = arith.constant 32 : index
    %c0_22 = arith.constant 0 : index
    %52 = vector.load %arg5[%c32_21, %c0_22] : memref<33x64xf32, #tpu.memory_space<vmem>>, vector<1x64xf32>
    %53 = vector.broadcast %52 : vector<1x64xf32> to vector<8x64xf32>
    %54 = arith.addf %51, %53 : vector<8x64xf32>
    %55 = tpu.concatenate %54, %49, %47 in 1 : vector<8x64xf32>, vector<8x32xf32>, vector<8x32xf32> -> vector<8x128xf32>
    %c0_23 = arith.constant 0 : index
    %c0_24 = arith.constant 0 : index
    %c0_25 = arith.constant 0 : index
    %56 = vector.load %arg6[%c0_23, %c0_24, %c0_25] : memref<1x8x128xf32, #tpu.memory_space<vmem>>, vector<1x8x128xf32>
    %57 = vector.shape_cast %56 : vector<1x8x128xf32> to vector<8x128xf32>
    %58 = vector.shape_cast %55 : vector<8x128xf32> to vector<1x8x128xf32>
    tpu.vector_store %arg6[%c0_23, %c0_24, %c0_25], %58 {strides = array<i32>} : memref<1x8x128xf32, #tpu.memory_space<vmem>>, vector<1x8x128xf32>,
    %59 = tpu.concatenate %49, %47 in 1 : vector<8x32xf32>, vector<8x32xf32> -> vector<8x64xf32>
    %c0_26 = arith.constant 0 : index
    %c0_27 = arith.constant 0 : index
    %60 = vector.load %arg7[%c0_26, %c0_27] : memref<8x64xf32, #tpu.memory_space<vmem>>, vector<8x64xf32>
    tpu.vector_store %arg7[%c0_26, %c0_27], %59 {strides = array<i32>} : memref<8x64xf32, #tpu.memory_space<vmem>>, vector<8x64xf32>,
    return
  }
  func.func @transform_0(%arg0: i32) -> (i32, i32, i32) {
    %c0_i32 = arith.constant 0 : i32
    %c0_i32_0 = arith.constant 0 : i32
    %c0_i32_1 = arith.constant 0 : i32
    return %arg0, %c0_i32, %c0_i32_0 : i32, i32, i32
  }
  func.func @transform_1(%arg0: i32) -> (i32, i32, i32) {
    %c0_i32 = arith.constant 0 : i32
    %c0_i32_0 = arith.constant 0 : i32
    %c0_i32_1 = arith.constant 0 : i32
    return %arg0, %c0_i32, %c0_i32_0 : i32, i32, i32
  }
  func.func @transform_2(%arg0: i32) -> (i32, i32) {
    %c0_i32 = arith.constant 0 : i32
    %c0_i32_0 = arith.constant 0 : i32
    %c0_i32_1 = arith.constant 0 : i32
    return %c0_i32, %c0_i32_0 : i32, i32
  }
  func.func @transform_3(%arg0: i32) -> (i32, i32) {
    %c0_i32 = arith.constant 0 : i32
    %c0_i32_0 = arith.constant 0 : i32
    %c0_i32_1 = arith.constant 0 : i32
    return %c0_i32, %c0_i32_0 : i32, i32
  }
  func.func @transform_4(%arg0: i32) -> (i32, i32) {
    %c0_i32 = arith.constant 0 : i32
    %c0_i32_0 = arith.constant 0 : i32
    %c0_i32_1 = arith.constant 0 : i32
    return %c0_i32, %c0_i32_0 : i32, i32
  }
  func.func @transform_5(%arg0: i32) -> (i32, i32, i32) {
    %c0_i32 = arith.constant 0 : i32
    %c0_i32_0 = arith.constant 0 : i32
    %c0_i32_1 = arith.constant 0 : i32
    return %arg0, %c0_i32, %c0_i32_0 : i32, i32, i32
  }
}

</mosaic_0001>

<llo_original>
// kernel: tpu_custom_call.1
$region0: #{tpu_custom_call.1}
  #allocation0 [shape = 'u32[]', space=smem, size = 0x4, offset = 0x4, fixed_abs, tag = 'smem constant byte address 0x4 - core index']
  #allocation1 [shape = 'u32[144,128]{1,0:T(1,128)}', space=vmem, size = 0x12000, scoped, tag = 'internal scratch']
  #allocation2 [shape = 'f32[8,64]{1,0:T(8,128)}', space=vmem, size = 0x1000, scoped, tag = 'scratch operand']
  %s0 = inlined_call_operand.vmem [shape: s32[1,8,1], index: 0, kind: input, shape index: {}]
  %s1 = inlined_call_operand.vmem [shape: f32[1,8,64], index: 1, kind: input, shape index: {}]
  %s2 = inlined_call_operand.vmem [shape: f32[129,32], index: 2, kind: input, shape index: {}]
  %s3 = inlined_call_operand.vmem [shape: f32[65,128], index: 3, kind: input, shape index: {}]
  %s4 = inlined_call_operand.vmem [shape: f32[33,64], index: 4, kind: input, shape index: {}]
  %s5 = inlined_call_operand.hbm [shape: f32[1,8,128], index: 5, kind: output, shape index: {}]
  %s6 = sld [smem:[#allocation0]]
  $region34: #{tpu_custom_call.1} parent=0
    _
  %s8 = ssub.s32 1, %s6
  %s9 = scalar_select 0, %s8, %s6
  $region1: #{tpu_custom_call.1} parent=0
    #allocation3 [shape = 'u8[4096]{0}', space=vmem, size = 0x1000, scoped, tag = 'output window, operand 0, single buffered']
    #allocation4 [shape = 's32[1]{0}', space=sflag, size = 0x4, scoped, tag = 'scoped memory for tpu_custom_call.1']
    %10 = vsyncpa [#allocation4], 0
    // Predicated region
    $region2: #{tpu_custom_call.1} parent=1 // pred_check
      _
    $region3: #{tpu_custom_call.1} parent=1 // pred_check_branch
      %12 = sbr.rel (0) target = $region5
    $region4: #{tpu_custom_call.1} parent=1 // pred_region
      _
    $region5: #{tpu_custom_call.1} parent=1 // pred_fallthru
      _
    // Predicated region
    $region6: #{tpu_custom_call.1} parent=1 // pred_check
      _
    $region7: #{tpu_custom_call.1} parent=1 // pred_check_branch
      %14 = sbr.rel (0) target = $region9
    $region8: #{tpu_custom_call.1} parent=1 // pred_region
      _
    $region9: #{tpu_custom_call.1} parent=1 // pred_fallthru
      _
    // Predicated region
    $region10: #{tpu_custom_call.1} parent=1 // pred_check
      _
    $region11: #{tpu_custom_call.1} parent=1 // pred_check_branch
      %16 = sbr.rel (0) target = $region13
    $region12: #{tpu_custom_call.1} parent=1 // pred_region
      _
    $region13: #{tpu_custom_call.1} parent=1 // pred_fallthru
      _
    // Predicated region
    $region14: #{tpu_custom_call.1} parent=1 // pred_check
      _
    $region15: #{tpu_custom_call.1} parent=1 // pred_check_branch
      %18 = sbr.rel (0) target = $region17
    $region16: #{tpu_custom_call.1} parent=1 // pred_region
      _
    $region17: #{tpu_custom_call.1} parent=1 // pred_fallthru
      _
    // Predicated region
    $region18: #{tpu_custom_call.1} parent=1 // pred_check
      _
    $region19: #{tpu_custom_call.1} parent=1 // pred_check_branch
      %20 = sbr.rel (0) target = $region21
    $region20: #{tpu_custom_call.1} parent=1 // pred_region
      _
    $region21: #{tpu_custom_call.1} parent=1 // pred_fallthru
      _
    %p21 = scmp.eq.s32.totalorder 0, 0
    // Predicated region
    $region22: #{tpu_custom_call.1} parent=1 // pred_check
      %p22 = pneg %p21
    $region23: #{tpu_custom_call.1} parent=1 // pred_check_branch
      %24 = sbr.rel (%p22) target = $region25
    $region24: #{tpu_custom_call.1} parent=1 // pred_region
      %vm25 = vcmask 523264
      %26 = vst.msk [vmem:[#allocation2] sm:$0xff] %vm25, 0.0
    $region25: #{tpu_custom_call.1} parent=1 // pred_fallthru
      _
    %v27 = vlaneseq
    %v28 = vand.u32 %v27, 127
    %v29 = vld [vmem:[%s0] sm:$0xff]
    %30 = vset.pattern.permute.xlu0 0
    %31 = vperm.xlu0 %30, %v29
    %v32 = vpop.permute.xlu0 %31
    %vm33 = vcmp.eq.s32.totalorder %v28, %v32
    %v34 = vsel %vm33, 1, 0
    %v35 = vcvt.s32.f32 %v34
    %v36 = vld [vmem:[%s1] sm:$0xff]
    %38 = vrot.lane.b32.xlu0 %v36, 64
    %v39 = vpop.permute.xlu0 %38
    %vm41 = vcmask 523264
    %v42 = vsel %vm41, %v35, %v39
    %v43 = vld [vmem:[%s2] sm:$0xff]
    %v44 = vld [vmem:[%s2 + $0x8] sm:$0xff]
    %v45 = vld [vmem:[%s2 + $0x10] sm:$0xff]
    %v46 = vld [vmem:[%s2 + $0x18] sm:$0xff]
    %v47 = vld [vmem:[%s2 + $0x20] sm:$0xff]
    %v48 = vld [vmem:[%s2 + $0x28] sm:$0xff]
    %v49 = vld [vmem:[%s2 + $0x30] sm:$0xff]
    %v50 = vld [vmem:[%s2 + $0x38] sm:$0xff]
    %v51 = vld [vmem:[%s2 + $0x40] sm:$0xff]
    %v52 = vld [vmem:[%s2 + $0x48] sm:$0xff]
    %v53 = vld [vmem:[%s2 + $0x50] sm:$0xff]
    %v54 = vld [vmem:[%s2 + $0x58] sm:$0xff]
    %v55 = vld [vmem:[%s2 + $0x60] sm:$0xff]
    %v56 = vld [vmem:[%s2 + $0x68] sm:$0xff]
    %v57 = vld [vmem:[%s2 + $0x70] sm:$0xff]
    %v58 = vld [vmem:[%s2 + $0x78] sm:$0xff]
    %v59 = vld [vmem:[%s2 + $0x80] sm:$0x1]
    %v60 = vlaneseq
    %v61 = vshrl.u32 %v60, 7
    %v62 = vsub.s32 0, %v61
    %v63 = vrot.slane %v59, %v62
    %64 = vmatprep.subr.mxu0 0.0
    %65 = vmatpush1.msra.mxu0 %v43
    %66 = vmatprep.subr.mxu0 0.0
    %67 = vmatpush1.msra.mxu0 %v44
    %68 = vmatprep.subr.mxu0 0.0
    %69 = vmatpush1.msra.mxu0 %v45
    %70 = vmatprep.subr.mxu0 0.0
    %71 = vmatpush1.msra.mxu0 %v46
    %72 = vmatprep.subr.mxu0 0.0
    %73 = vmatpush1.msra.mxu0 %v47
    %74 = vmatprep.subr.mxu0 0.0
    %75 = vmatpush1.msra.mxu0 %v48
    %76 = vmatprep.subr.mxu0 0.0
    %77 = vmatpush1.msra.mxu0 %v49
    %78 = vmatprep.subr.mxu0 0.0
    %79 = vmatpush1.msra.mxu0 %v50
    %80 = vmatprep.subr.mxu0 0.0
    %81 = vmatpush1.msra.mxu0 %v51
    %82 = vmatprep.subr.mxu0 0.0
    %83 = vmatpush1.msra.mxu0 %v52
    %84 = vmatprep.subr.mxu0 0.0
    %85 = vmatpush1.msra.mxu0 %v53
    %86 = vmatprep.subr.mxu0 0.0
    %87 = vmatpush1.msra.mxu0 %v54
    %88 = vmatprep.subr.mxu0 0.0
    %89 = vmatpush1.msra.mxu0 %v55
    %90 = vmatprep.subr.mxu0 0.0
    %91 = vmatpush1.msra.mxu0 %v56
    %92 = vmatprep.subr.mxu0 0.0
    %93 = vmatpush1.msra.mxu0 %v57
    %94 = vmatprep.subr.mxu0 0.0
    %95 = vmatpush1.msra.mxu0 %v58
    %96 = vmatprep.subr.mxu0 0.0
    %97 = vmatpush1.msra.mxu0 0.0
    %98 = vmatprep.subr.mxu0 0.0
    %99 = vmatpush1.msra.mxu0 0.0
    %100 = vmatprep.subr.mxu0 0.0
    %101 = vmatpush1.msra.mxu0 0.0
    %102 = vmatprep.subr.mxu0 0.0
    %103 = vmatpush1.msra.mxu0 0.0
    %104 = vmatprep.subr.mxu0 0.0
    %105 = vmatpush1.msra.mxu0 0.0
    %106 = vmatprep.subr.mxu0 0.0
    %107 = vmatpush1.msra.mxu0 0.0
    %108 = vmatprep.subr.mxu0 0.0
    %109 = vmatpush1.msra.mxu0 0.0
    %110 = vmatprep.subr.mxu0 0.0
    %111 = vmatpush1.msra.mxu0 0.0
    %112 = vmatprep.subr.mxu0 0.0
    %113 = vmatpush1.msra.mxu0 0.0
    %114 = vmatprep.subr.mxu0 0.0
    %115 = vmatpush1.msra.mxu0 0.0
    %116 = vmatprep.subr.mxu0 0.0
    %117 = vmatpush1.msra.mxu0 0.0
    %118 = vmatprep.subr.mxu0 0.0
    %119 = vmatpush1.msra.mxu0 0.0
    %120 = vmatprep.subr.mxu0 0.0
    %121 = vmatpush1.msra.mxu0 0.0
    %122 = vmatprep.subr.mxu0 0.0
    %123 = vmatpush1.msra.mxu0 0.0
    %124 = vmatprep.subr.mxu0 0.0
    %125 = vmatpush1.msra.mxu0 0.0
    %126 = vmatprep.subr.mxu0 0.0
    %127 = vmatpush1.msra.mxu0 0.0
    %128 = vmatprep.mubr.f32.mxu0 0.0
    %129 = vmatmul.mubr.f32.gmra.mrb[0].mxu0 %v42
    %v130 = vpop.f32.mrb[0].mxu0
    %v131 = vadd.f32 %v63, %v130
    %v132 = vpop.f32.mrb[0].mxu0
    %133 = vdwg.mxu0
    %v134 = vmax.f32 %v131, 0.0
    %v135 = vld [vmem:[#allocation2] sm:$0xff]
    %137 = vrot.lane.b32.xlu0 %v135, 32
    %v138 = vpop.permute.xlu0 %137
    %vm140 = vcmask 261120
    %v141 = vsel %vm140, %v134, %v138
    %v142 = vld [vmem:[%s3] sm:$0xff]
    %v143 = vld [vmem:[%s3 + $0x8] sm:$0xff]
    %v144 = vld [vmem:[%s3 + $0x10] sm:$0xff]
    %v145 = vld [vmem:[%s3 + $0x18] sm:$0xff]
    %v146 = vld [vmem:[%s3 + $0x20] sm:$0xff]
    %v147 = vld [vmem:[%s3 + $0x28] sm:$0xff]
    %v148 = vld [vmem:[%s3 + $0x30] sm:$0xff]
    %v149 = vld [vmem:[%s3 + $0x38] sm:$0xff]
    %v150 = vld [vmem:[%s3 + $0x40] sm:$0x1]
    %v151 = vlaneseq
    %v152 = vshrl.u32 %v151, 7
    %v153 = vsub.s32 0, %v152
    %v154 = vrot.slane %v150, %v153
    %v156 = vsel %vm41, %v141, 0
    %158 = vmatprep.subr.mxu0 0.0
    %159 = vmatpush1.msra.mxu0 %v142
    %160 = vmatprep.subr.mxu0 0.0
    %161 = vmatpush1.msra.mxu0 %v143
    %162 = vmatprep.subr.mxu0 0.0
    %163 = vmatpush1.msra.mxu0 %v144
    %164 = vmatprep.subr.mxu0 0.0
    %165 = vmatpush1.msra.mxu0 %v145
    %166 = vmatprep.subr.mxu0 0.0
    %167 = vmatpush1.msra.mxu0 %v146
    %168 = vmatprep.subr.mxu0 0.0
    %169 = vmatpush1.msra.mxu0 %v147
    %170 = vmatprep.subr.mxu0 0.0
    %171 = vmatpush1.msra.mxu0 %v148
    %172 = vmatprep.subr.mxu0 0.0
    %173 = vmatpush1.msra.mxu0 %v149
    %174 = vmatprep.subr.mxu0 0.0
    %175 = vmatpush1.msra.mxu0 0.0
    %176 = vmatprep.subr.mxu0 0.0
    %177 = vmatpush1.msra.mxu0 0.0
    %178 = vmatprep.subr.mxu0 0.0
    %179 = vmatpush1.msra.mxu0 0.0
    %180 = vmatprep.subr.mxu0 0.0
    %181 = vmatpush1.msra.mxu0 0.0
    %182 = vmatprep.subr.mxu0 0.0
    %183 = vmatpush1.msra.mxu0 0.0
    %184 = vmatprep.subr.mxu0 0.0
    %185 = vmatpush1.msra.mxu0 0.0
    %186 = vmatprep.subr.mxu0 0.0
    %187 = vmatpush1.msra.mxu0 0.0
    %188 = vmatprep.subr.mxu0 0.0
    %189 = vmatpush1.msra.mxu0 0.0
    %190 = vmatprep.subr.mxu0 0.0
    %191 = vmatpush1.msra.mxu0 0.0
    %192 = vmatprep.subr.mxu0 0.0
    %193 = vmatpush1.msra.mxu0 0.0
    %194 = vmatprep.subr.mxu0 0.0
    %195 = vmatpush1.msra.mxu0 0.0
    %196 = vmatprep.subr.mxu0 0.0
    %197 = vmatpush1.msra.mxu0 0.0
    %198 = vmatprep.subr.mxu0 0.0
    %199 = vmatpush1.msra.mxu0 0.0
    %200 = vmatprep.subr.mxu0 0.0
    %201 = vmatpush1.msra.mxu0 0.0
    %202 = vmatprep.subr.mxu0 0.0
    %203 = vmatpush1.msra.mxu0 0.0
    %204 = vmatprep.subr.mxu0 0.0
    %205 = vmatpush1.msra.mxu0 0.0
    %206 = vmatprep.subr.mxu0 0.0
    %207 = vmatpush1.msra.mxu0 0.0
    %208 = vmatprep.subr.mxu0 0.0
    %209 = vmatpush1.msra.mxu0 0.0
    %210 = vmatprep.subr.mxu0 0.0
    %211 = vmatpush1.msra.mxu0 0.0
    %212 = vmatprep.subr.mxu0 0.0
    %213 = vmatpush1.msra.mxu0 0.0
    %214 = vmatprep.subr.mxu0 0.0
    %215 = vmatpush1.msra.mxu0 0.0
    %216 = vmatprep.subr.mxu0 0.0
    %217 = vmatpush1.msra.mxu0 0.0
    %218 = vmatprep.subr.mxu0 0.0
    %219 = vmatpush1.msra.mxu0 0.0
    %220 = vmatprep.subr.mxu0 0.0
    %221 = vmatpush1.msra.mxu0 0.0
    %222 = vmatprep.mubr.f32.mxu0 0.0
    %223 = vmatmul.mubr.f32.gmra.mrb[0].mxu0 %v156
    %v224 = vpop.f32.mrb[0].mxu0
    %v225 = vadd.f32 %v154, %v224
    %v226 = vpop.f32.mrb[0].mxu0
    %227 = vdwg.mxu0
    %vm228 = vcmp.ge.s32.totalorder %v28, 64
    %vm229 = vcmp.lt.s32.totalorder %v28, 96
    %vm230 = vmand %vm228, %vm229
    %v231 = vtanh.pop %v225
    %v232 = vxor.u32 %v225, 2147483648
    %v233 = vmul.f32 %v232, 1.442695
    %v234 = vpow.pop %v233
    %v235 = vadd.f32 %v234, 1.0
    %v236 = vrcp.pop %v235
    %v237 = vmul.f32 1.0, %v236
    %v238 = vsel %vm230, %v231, %v237
    %v239 = vmul.f32 %v238, %v135
    %241 = vrot.lane.b32.xlu0 %v238, 64
    %v242 = vpop.permute.xlu0 %241
    %v244 = vmul.f32 %v238, %v242
    %246 = vrot.lane.b32.xlu0 %v244, 32
    %v247 = vpop.permute.xlu0 %246
    %v249 = vadd.f32 %v239, %v247
    %v250 = vtanh.pop %v249
    %252 = vrot.lane.b32.xlu0 %v250, 64
    %v253 = vpop.permute.xlu0 %252
    %v255 = vmul.f32 %v238, %v253
    %v256 = vld [vmem:[%s4] sm:$0xff]
    %v257 = vld [vmem:[%s4 + $0x8] sm:$0xff]
    %v258 = vld [vmem:[%s4 + $0x10] sm:$0xff]
    %v259 = vld [vmem:[%s4 + $0x18] sm:$0xff]
    %v260 = vld [vmem:[%s4 + $0x20] sm:$0x1]
    %v261 = vlaneseq
    %v262 = vshrl.u32 %v261, 7
    %v263 = vsub.s32 0, %v262
    %v264 = vrot.slane %v260, %v263
    %266 = vrot.lane.b32.xlu0 %v255, 32
    %v267 = vpop.permute.xlu0 %266
    %v268 = vsel %vm140, %v267, 0
    %270 = vmatprep.subr.mxu0 0.0
    %271 = vmatpush1.msra.mxu0 %v256
    %272 = vmatprep.subr.mxu0 0.0
    %273 = vmatpush1.msra.mxu0 %v257
    %274 = vmatprep.subr.mxu0 0.0
    %275 = vmatpush1.msra.mxu0 %v258
    %276 = vmatprep.subr.mxu0 0.0
    %277 = vmatpush1.msra.mxu0 %v259
    %278 = vmatprep.subr.mxu0 0.0
    %279 = vmatpush1.msra.mxu0 0.0
    %280 = vmatprep.subr.mxu0 0.0
    %281 = vmatpush1.msra.mxu0 0.0
    %282 = vmatprep.subr.mxu0 0.0
    %283 = vmatpush1.msra.mxu0 0.0
    %284 = vmatprep.subr.mxu0 0.0
    %285 = vmatpush1.msra.mxu0 0.0
    %286 = vmatprep.subr.mxu0 0.0
    %287 = vmatpush1.msra.mxu0 0.0
    %288 = vmatprep.subr.mxu0 0.0
    %289 = vmatpush1.msra.mxu0 0.0
    %290 = vmatprep.subr.mxu0 0.0
    %291 = vmatpush1.msra.mxu0 0.0
    %292 = vmatprep.subr.mxu0 0.0
    %293 = vmatpush1.msra.mxu0 0.0
    %294 = vmatprep.subr.mxu0 0.0
    %295 = vmatpush1.msra.mxu0 0.0
    %296 = vmatprep.subr.mxu0 0.0
    %297 = vmatpush1.msra.mxu0 0.0
    %298 = vmatprep.subr.mxu0 0.0
    %299 = vmatpush1.msra.mxu0 0.0
    %300 = vmatprep.subr.mxu0 0.0
    %301 = vmatpush1.msra.mxu0 0.0
    %302 = vmatprep.subr.mxu0 0.0
    %303 = vmatpush1.msra.mxu0 0.0
    %304 = vmatprep.subr.mxu0 0.0
    %305 = vmatpush1.msra.mxu0 0.0
    %306 = vmatprep.subr.mxu0 0.0
    %307 = vmatpush1.msra.mxu0 0.0
    %308 = vmatprep.subr.mxu0 0.0
    %309 = vmatpush1.msra.mxu0 0.0
    %310 = vmatprep.subr.mxu0 0.0
    %311 = vmatpush1.msra.mxu0 0.0
    %312 = vmatprep.subr.mxu0 0.0
    %313 = vmatpush1.msra.mxu0 0.0
    %314 = vmatprep.subr.mxu0 0.0
    %315 = vmatpush1.msra.mxu0 0.0
    %316 = vmatprep.subr.mxu0 0.0
    %317 = vmatpush1.msra.mxu0 0.0
    %318 = vmatprep.subr.mxu0 0.0
    %319 = vmatpush1.msra.mxu0 0.0
    %320 = vmatprep.subr.mxu0 0.0
    %321 = vmatpush1.msra.mxu0 0.0
    %322 = vmatprep.subr.mxu0 0.0
    %323 = vmatpush1.msra.mxu0 0.0
    %324 = vmatprep.subr.mxu0 0.0
    %325 = vmatpush1.msra.mxu0 0.0
    %326 = vmatprep.subr.mxu0 0.0
    %327 = vmatpush1.msra.mxu0 0.0
    %328 = vmatprep.subr.mxu0 0.0
    %329 = vmatpush1.msra.mxu0 0.0
    %330 = vmatprep.subr.mxu0 0.0
    %331 = vmatpush1.msra.mxu0 0.0
    %332 = vmatprep.subr.mxu0 0.0
    %333 = vmatpush1.msra.mxu0 0.0
    %334 = vmatprep.mubr.f32.mxu0 0.0
    %335 = vmatmul.mubr.f32.gmra.mrb[0].mxu0 %v268
    %v336 = vpop.f32.mrb[0].mxu0
    %v337 = vadd.f32 %v264, %v336
    %v338 = vpop.f32.mrb[0].mxu0
    %339 = vdwg.mxu0
    %340 = vrot.lane.b32.xlu0 %v255, 96
    %v341 = vpop.permute.xlu0 %340
    %344 = vrot.lane.b32.xlu0 %v249, 64
    %v345 = vpop.permute.xlu0 %344
    %v347 = vsel %vm41, %v337, %v341
    %vm348 = vcmask 785408
    %v349 = vsel %vm348, %v347, %v345
    %350 = vst [vmem:[#allocation3] sm:$0xff] %v349
    %v352 = vsel %vm140, %v267, %v249
    %353 = vst.msk [vmem:[#allocation2] sm:$0xff] %vm41, %v352
    // Predicated region
    $region26: #{tpu_custom_call.1} parent=1 // pred_check
      _
    $region27: #{tpu_custom_call.1} parent=1 // pred_check_branch
      %355 = sbr.rel (0) target = $region29
    $region28: #{tpu_custom_call.1} parent=1 // pred_region
      %s357 = ssub.s32 128, 128
      %358 = vsyncadd [#allocation4], %s357
      %s360 = sshll.u32 [#allocation3], 4
      %s361 = int_to_ptr.vmem [resolvable:$true] %s360
      %363 = dma.vmem_to_hbm [thread:$0]  %s361, 128, %s5, [#allocation4]
    $region29: #{tpu_custom_call.1} parent=1 // pred_fallthru
      _
    // Predicated region
    $region30: #{tpu_custom_call.1} parent=1 // pred_check
      _
    $region31: #{tpu_custom_call.1} parent=1 // pred_check_branch
      %365 = sbr.rel (0) target = $region33
    $region32: #{tpu_custom_call.1} parent=1 // pred_region
      %366 = dma.done [#allocation4], 128
    $region33: #{tpu_custom_call.1} parent=1 // pred_fallthru
      _
    %367 = vsyncpa [#allocation4], 1

</llo_original>
